<compile_context>
chip_gen: v7x
topology: tpu7x:2x2x1
jax: 0.10.0
libtpu: 0.0.40
codegen_flags: <defaults>
</compile_context>

<pallas_src>
import functools

import jax
import jax.numpy as jnp
import numpy as np
from jax.experimental import pallas as pl
from jax.experimental.pallas import tpu as pltpu

_BLOCK_BUDGET_BYTES = 2 * 1024 * 1024  # per-buffer VMEM budget (fits v5e's default too)


# ----------------------------------------------------------------------------------
# Kernels
# ----------------------------------------------------------------------------------
def _nested_dropout_flat_kernel(thr_ref, x_ref, o_ref):
    """Lane-dense path.

    thr_ref : (B,) int32 in SMEM — number of *elements* kept per sample (= b * tail).
    x_ref/o_ref : (1, R_tile, C) block of the (B, R, C) flattened input/output.
    """
    i = pl.program_id(0)          # batch index
    j = pl.program_id(1)          # row-tile index
    thr = thr_ref[i]              # scalar read from SMEM
    r, c = x_ref.shape[1], x_ref.shape[2]
    row = jax.lax.broadcasted_iota(jnp.int32, (r, c), 0)
    col = jax.lax.broadcasted_iota(jnp.int32, (r, c), 1)
    flat = j * (r * c) + row * c + col          # global flat element index in this batch row
    o_ref[0] = jnp.where(flat < thr, x_ref[0], jnp.zeros((), x_ref.dtype))


def _nested_dropout_unit_kernel(b_ref, x_ref, o_ref):
    """Fallback path: natural (num_units, tail) layout, one batch element per step.

    b_ref : (B,) int32 in SMEM — number of units kept per sample.
    x_ref/o_ref : (1, U, tail) block.
    """
    i = pl.program_id(0)
    thr = b_ref[i]
    u, td = x_ref.shape[1], x_ref.shape[2]
    unit_idx = jax.lax.broadcasted_iota(jnp.int32, (u, td), 0)
    o_ref[0] = jnp.where(unit_idx < thr, x_ref[0], jnp.zeros((), x_ref.dtype))


# ----------------------------------------------------------------------------------
# Host-side helpers
# ----------------------------------------------------------------------------------
def _geometric_plus_one(rng, batch_size, rho, num_units):
    """b ~ Geometric(rho) + 1 (PyTorch 'failures before first success' convention),
    sampled via inverse CDF, clamped to num_units.  Returns int32 (B,)."""
    u = jax.random.uniform(rng, (batch_size,), jnp.float32, minval=1e-6, maxval=1.0)
    g = jnp.floor(jnp.log(u) / jnp.log1p(-rho))           # Geometric(rho), support {0,1,...}
    b = jnp.clip(g + 1.0, 1.0, float(num_units))
    return b.astype(jnp.int32)


def _choose_flat_chunk(L):
    """Largest multiple-of-128 divisor of L that still leaves >=8 rows (good vreg
    packing); otherwise the smallest one; None if L is not a multiple of 128."""
    cands = [c for c in (2048, 1024, 512, 256, 128) if L % c == 0]
    if not cands:
        return None
    good = [c for c in cands if L // c >= 8]
    return max(good) if good else min(cands)


def _choose_row_tile(R, C, itemsize):
    """Largest row-tile dividing R that is a multiple of 8 (or R itself) and keeps
    the block under the VMEM budget."""
    if R * C * itemsize <= _BLOCK_BUDGET_BYTES:
        return R
    best = None
    r = 8
    while r <= R:
        if R % r == 0 and r * C * itemsize <= _BLOCK_BUDGET_BYTES:
            best = r
        r += 8
    return best if best is not None else R


# ----------------------------------------------------------------------------------
# Public entry point
# ----------------------------------------------------------------------------------
@functools.partial(jax.jit, static_argnames=("num_units", "rho", "training"))
def nested_dropout(x, rng, *, num_units, rho, training):
    """x: (B, num_units, ...).  Training: mask along the unit axis; eval: identity."""
    if not training:
        return x

    B, U = x.shape[0], x.shape[1]
    assert U == num_units, "second axis of x must be num_units"
    tail = 1
    for s in x.shape[2:]:
        tail *= s
    L = U * tail

    b = _geometric_plus_one(rng, B, rho, num_units)

    C = _choose_flat_chunk(L)
    if C is not None:
        # Lane-dense flat path: kept units are a contiguous element prefix [0, b*tail).
        R = L // C
        r_tile = _choose_row_tile(R, C, x.dtype.itemsize)
        x3 = x.reshape(B, R, C)
        thr_elems = b * tail                       # threshold in elements, int32
        out = pl.pallas_call(
            _nested_dropout_flat_kernel,
            out_shape=jax.ShapeDtypeStruct((B, R, C), x.dtype),
            grid_spec=pltpu.PrefetchScalarGridSpec(
                num_scalar_prefetch=1,
                grid=(B, R // r_tile),
                in_specs=[pl.BlockSpec((1, r_tile, C), lambda i, j, thr: (i, j, 0))],
                out_specs=pl.BlockSpec((1, r_tile, C), lambda i, j, thr: (i, j, 0)),
            ),
            compiler_params=pltpu.CompilerParams(
                dimension_semantics=("parallel", "parallel")),
        )(thr_elems, x3)
    else:
        # Fallback: natural layout, whole batch element per grid step.
        # TODO(synk): tile the tail axis here too if a per-batch payload ever
        # exceeds the VMEM budget with a non-128-multiple element count.
        x3 = x.reshape(B, U, tail)
        out = pl.pallas_call(
            _nested_dropout_unit_kernel,
            out_shape=jax.ShapeDtypeStruct((B, U, tail), x.dtype),
            grid_spec=pltpu.PrefetchScalarGridSpec(
                num_scalar_prefetch=1,
                grid=(B,),
                in_specs=[pl.BlockSpec((1, U, tail), lambda i, bref: (i, 0, 0))],
                out_specs=pl.BlockSpec((1, U, tail), lambda i, bref: (i, 0, 0)),
            ),
            compiler_params=pltpu.CompilerParams(
                dimension_semantics=("parallel",)),
        )(b, x3)
    return out.reshape(x.shape)


# ----------------------------------------------------------------------------------
if __name__ == "__main__":
    key = jax.random.PRNGKey(0)
    xkey, dkey, x2key, d2key = jax.random.split(key, 4)
    rho = 0.1

    # --- Test 1: lane-dense flat path (num_units * dim is a multiple of 128).
    B, num_units, dim = 2, 16, 32
    x = jax.random.normal(xkey, (B, num_units, dim), jnp.float32)
    y = nested_dropout(x, dkey, num_units=num_units, rho=rho, training=True)
    jax.block_until_ready(y)

    b = _geometric_plus_one(dkey, B, rho, num_units)
    ref_mask = (jnp.arange(num_units)[None, :] < b[:, None]).astype(x.dtype)[:, :, None]
    np.testing.assert_allclose(np.asarray(y), np.asarray(x * ref_mask), rtol=1e-6, atol=1e-6)

    # --- Test 2: fallback path (per-batch payload not a multiple of 128 elements).
    B2, num_units2, dim2 = 3, 16, 10
    x2 = jax.random.normal(x2key, (B2, num_units2, dim2), jnp.float32)
    y2 = nested_dropout(x2, d2key, num_units=num_units2, rho=rho, training=True)
    jax.block_until_ready(y2)

    b2 = _geometric_plus_one(d2key, B2, rho, num_units2)
    ref_mask2 = (jnp.arange(num_units2)[None, :] < b2[:, None]).astype(x2.dtype)[:, :, None]
    np.testing.assert_allclose(np.asarray(y2), np.asarray(x2 * ref_mask2), rtol=1e-6, atol=1e-6)

    # --- Eval path is identity (no kernel launched).
    y_eval = nested_dropout(x, dkey, num_units=num_units, rho=rho, training=False)
    np.testing.assert_allclose(np.asarray(y_eval), np.asarray(x), rtol=0, atol=0)

    assert y.shape == x.shape and y2.shape == x2.shape
    print("KERNEL_OK")
</pallas_src>

<mosaic_0001>
module attributes {stable_mosaic.version = 11 : i64} {
  func.func @_nested_dropout_flat_kernel(%arg0: i32, %arg1: i32, %arg2: memref<2xi32, #tpu.memory_space<smem>>, %arg3: memref<1x4x128xf32, #tpu.memory_space<vmem>>, %arg4: memref<1x4x128xf32, #tpu.memory_space<vmem>>) attributes {dimension_semantics = [#tpu.dimension_semantics<parallel>, #tpu.dimension_semantics<parallel>], iteration_bounds = array<i64: 2, 1>, scalar_prefetch = 1 : i64, scratch_operands = 0 : i64, tpu.core_type = #tpu.core_type<tc>, window_params = [{transform_indices = @transform_0, window_bounds = array<i64: 1, 4, 128>}, {transform_indices = @transform_1, window_bounds = array<i64: 1, 4, 128>}]} {
    %0 = arith.index_cast %arg0 : i32 to index
    %1 = memref.load %arg2[%0] : memref<2xi32, #tpu.memory_space<smem>>
    %2 = tpu.iota {dimensions = array<i32: 0>} : vector<4x128xi32>
    %3 = tpu.iota {dimensions = array<i32: 1>} : vector<4x128xi32>
    %c512_i32 = arith.constant 512 : i32
    %4 = arith.muli %arg1, %c512_i32 : i32
    %c128_i32 = arith.constant 128 : i32
    %5 = vector.broadcast %c128_i32 : i32 to vector<4x128xi32>
    %6 = arith.muli %2, %5 : vector<4x128xi32>
    %7 = vector.broadcast %4 : i32 to vector<4x128xi32>
    %8 = arith.addi %7, %6 : vector<4x128xi32>
    %9 = arith.addi %8, %3 : vector<4x128xi32>
    %10 = vector.broadcast %1 : i32 to vector<4x128xi32>
    %11 = arith.cmpi slt, %9, %10 : vector<4x128xi32>
    %c0 = arith.constant 0 : index
    %c0_0 = arith.constant 0 : index
    %c0_1 = arith.constant 0 : index
    %12 = vector.load %arg3[%c0, %c0_0, %c0_1] : memref<1x4x128xf32, #tpu.memory_space<vmem>>, vector<1x4x128xf32>
    %13 = vector.shape_cast %12 : vector<1x4x128xf32> to vector<4x128xf32>
    %cst = arith.constant 0.000000e+00 : f32
    %14 = vector.broadcast %cst : f32 to vector<4x128xf32>
    %15 = arith.select %11, %13, %14 : vector<4x128xi1>, vector<4x128xf32>
    %c0_2 = arith.constant 0 : index
    %c0_3 = arith.constant 0 : index
    %c0_4 = arith.constant 0 : index
    %16 = vector.load %arg4[%c0_2, %c0_3, %c0_4] : memref<1x4x128xf32, #tpu.memory_space<vmem>>, vector<1x4x128xf32>
    %17 = vector.shape_cast %16 : vector<1x4x128xf32> to vector<4x128xf32>
    %18 = vector.shape_cast %15 : vector<4x128xf32> to vector<1x4x128xf32>
    tpu.vector_store %arg4[%c0_2, %c0_3, %c0_4], %18 {strides = array<i32>} : memref<1x4x128xf32, #tpu.memory_space<vmem>>, vector<1x4x128xf32>,
    return
  }
  func.func @transform_0(%arg0: i32, %arg1: i32, %arg2: memref<2xi32, #tpu.memory_space<smem>>) -> (i32, i32, i32) {
    %c0_i32 = arith.constant 0 : i32
    %c0_i32_0 = arith.constant 0 : i32
    return %arg0, %arg1, %c0_i32 : i32, i32, i32
  }
  func.func @transform_1(%arg0: i32, %arg1: i32, %arg2: memref<2xi32, #tpu.memory_space<smem>>) -> (i32, i32, i32) {
    %c0_i32 = arith.constant 0 : i32
    %c0_i32_0 = arith.constant 0 : i32
    return %arg0, %arg1, %c0_i32 : i32, i32, i32
  }
}

</mosaic_0001>

<llo_original>
// kernel: nested_dropout.1
$region0: #{nested_dropout.1}
  #allocation0 [shape = 'u32[]', space=smem, size = 0x4, offset = 0x4, fixed_abs, tag = 'smem constant byte address 0x4 - core index']
  #allocation1 [shape = 'u32[144,128]{1,0:T(1,128)}', space=vmem, size = 0x12000, scoped, tag = 'internal scratch']
  #allocation2 [shape = 's32[1]{0}', space=sflag, size = 0x4, scoped, tag = 'scoped memory for nested_dropout.1']
  #allocation3 [shape = 'u8[512]{0}', space=smem, size = 0x200, scoped, tag = 'prefetched SMEM operand 0']
  %s0 = inlined_call_operand.vmem [shape: s32[2], index: 0, kind: input, shape index: {}]
  %s1 = inlined_call_operand.vmem [shape: f32[2,4,128], index: 1, kind: input, shape index: {}]
  %s2 = inlined_call_operand.vmem [shape: f32[2,4,128], index: 2, kind: output, shape index: {}]
  %s3 = sld [smem:[#allocation0]]
  $region37: #{nested_dropout.1} parent=0
    _
  %s5 = ssub.s32 1, %s3
  %s6 = scalar_select 0, %s5, %s3
  %s7 = sshll.u32 %s0, 4
  %s8 = int_to_ptr.vmem [resolvable:$true] %s7
  %10 = dma.vmem_to_smem %s8, 16, [#allocation3], [#allocation2]
  %11 = dma.done [#allocation2], 16
  %12 = sfence
  loop: start=0, step=1, limit=4
  $region2: #{nested_dropout.1} parent=0 // loop_pre_header
    _
  $region3: #{nested_dropout.1} parent=0 // loop_header
    %s14 = sphi 0, %s18
    %p15 = scmp.ge.s32.totalorder %s14, 4
    %s21 = sphi 0, %s33
    %s22 = sphi 0, %s29
    %s23 = sphi 0, %s21
    %s24 = sphi 0, %s22
    %s25 = sphi 0, %s23
    %s26 = sphi 0, %s24
    %s38 = sphi 0, %s40
    %s41 = sphi 0, %s38
    %s42 = sphi 0, %s41
    %s58 = sphi 0, %s42
    %s66 = sphi 0, %s68
    %s69 = sphi 0, %s66
    %s70 = sphi 0, %s69
    %s86 = sphi 0, %s70
  $region4: #{nested_dropout.1} parent=0 // loop_header_branch
    %17 = sbr.rel (%p15) target = $region8
  $region5: #{nested_dropout.1} parent=0 // loop_body
    %s19 = ssub.s32 %s14, 1
    %s20 = ssub.s32 %s14, 2
    %s27 = sadd.s32 1, %s22
    %p28 = scmp.ge.s32.totalorder %s27, 1
    %s29 = scalar_select %p28, 0, %s27
    %s30 = sadd.s32 1, %s21
    %s31 = scalar_select %p28, %s30, %s21
    %p32 = scmp.ge.s32.totalorder %s31, 2
    %s33 = scalar_select %p32, 0, %s31
    %s34 = ssub.s32 %s21, %s33
    %s35 = ssub.s32 %s22, %s29
    %s36 = sor.u32 %s34, %s35
    %p37 = scmp.eq.s32.totalorder %s36, 0
    %s39 = sadd.s32 %s38, 1
    %s40 = scalar_select %p37, %s38, %s39
    %p43 = pneg %p37
    %p44 = scmp.eq.s32.totalorder %s14, 1
    %p45 = por %p43, %p44
    %p46 = scmp.ne.s32.totalorder %s38, %s41
    %p47 = scmp.eq.s32.totalorder %s14, 0
    %p48 = por %p46, %p47
    %p49 = scmp.ne.s32.totalorder %s38, %s41
    %p50 = scmp.eq.s32.totalorder %s19, 1
    %p51 = por %p49, %p50
    %p52 = scmp.ne.s32.totalorder %s41, %s42
    %p53 = scmp.eq.s32.totalorder %s19, 0
    %p54 = por %p52, %p53
    %p55 = scmp.ne.s32.totalorder %s41, %s42
    %p56 = scmp.eq.s32.totalorder %s20, 1
    %p57 = por %p55, %p56
    %p59 = scmp.ne.s32.totalorder %s42, %s58
    %p60 = scmp.eq.s32.totalorder %s20, 0
    %p61 = por %p59, %p60
    %s62 = ssub.s32 %s21, %s33
    %s63 = ssub.s32 %s22, %s29
    %s64 = sor.u32 %s62, %s63
    %p65 = scmp.eq.s32.totalorder %s64, 0
    %s67 = sadd.s32 %s66, 1
    %s68 = scalar_select %p65, %s66, %s67
    %p71 = pneg %p65
    %p72 = scmp.eq.s32.totalorder %s14, 1
    %p73 = por %p71, %p72
    %p74 = scmp.ne.s32.totalorder %s66, %s69
    %p75 = scmp.eq.s32.totalorder %s14, 0
    %p76 = por %p74, %p75
    %p77 = scmp.ne.s32.totalorder %s66, %s69
    %p78 = scmp.eq.s32.totalorder %s19, 1
    %p79 = por %p77, %p78
    %p80 = scmp.ne.s32.totalorder %s69, %s70
    %p81 = scmp.eq.s32.totalorder %s19, 0
    %p82 = por %p80, %p81
    %p83 = scmp.ne.s32.totalorder %s69, %s70
    %p84 = scmp.eq.s32.totalorder %s20, 1
    %p85 = por %p83, %p84
    %p87 = scmp.ne.s32.totalorder %s70, %s86
    %p88 = scmp.eq.s32.totalorder %s20, 0
    %p89 = por %p87, %p88
    %p90 = scmp.le.s32.totalorder 1, %s14
    %p91 = scmp.lt.s32.totalorder %s14, 3
    %p92 = pnand %p90, %p91
    %p93 = pneg %p92
    // Predicated region
    $region9: #{nested_dropout.1} parent=5 // pred_check
      _
    $region10: #{nested_dropout.1} parent=5 // pred_check_branch
      %95 = sbr.rel (%p92) target = $region12
    $region11: #{nested_dropout.1} parent=5 // pred_region
      %s96 = ssub.s32 %s14, 1
    $region12: #{nested_dropout.1} parent=5 // pred_fallthru
      _
    %p97 = scmp.lt.s32.totalorder %s14, 2
    // Predicated region
    $region13: #{nested_dropout.1} parent=5 // pred_check
      %p98 = pneg %p97
    $region14: #{nested_dropout.1} parent=5 // pred_check_branch
      %100 = sbr.rel (%p98) target = $region16
    $region15: #{nested_dropout.1} parent=5 // pred_region
      // Predicated region
      $region17: #{nested_dropout.1} parent=15 // pred_check
        %p101 = pneg %p48
      $region18: #{nested_dropout.1} parent=15 // pred_check_branch
        %103 = sbr.rel (%p101) target = $region20
      $region19: #{nested_dropout.1} parent=15 // pred_region
        %p104 = scmp.lt.s32.totalorder %s21, 1
        %s105 = scalar_select %p104, %s21, 1
        %p106 = scmp.lt.s32.totalorder %s22, 0
        %s107 = scalar_select %p106, %s22, 0
        %s108 = sadd.s32 %s107, %s105
        %s109 = smul.addr %s108, 4
        %s110 = scalar_lea.vmem %s1, %s109
      $region20: #{nested_dropout.1} parent=15 // pred_fallthru
        _
    $region16: #{nested_dropout.1} parent=5 // pred_fallthru
      _
    %p111 = scmp.le.s32.totalorder 1, %s14
    %p112 = scmp.lt.s32.totalorder %s14, 3
    %p113 = pnand %p111, %p112
    %p114 = pneg %p113
    // Predicated region
    $region21: #{nested_dropout.1} parent=5 // pred_check
      _
    $region22: #{nested_dropout.1} parent=5 // pred_check_branch
      %116 = sbr.rel (%p113) target = $region24
    $region23: #{nested_dropout.1} parent=5 // pred_region
      %s117 = ssub.s32 %s14, 1
      %p118 = scmp.lt.s32.totalorder %s23, 1
      %s119 = scalar_select %p118, %s23, 1
      %p120 = scmp.lt.s32.totalorder %s24, 0
      %s121 = scalar_select %p120, %s24, 0
      %s122 = sadd.s32 %s121, %s119
      %s123 = smul.addr %s122, 4
      %s124 = scalar_lea.vmem %s1, %s123
      %p125 = pneg %p54
      %p126 = pneg %p51
      %p127 = pneg %p82
      %p128 = pneg %p79
      %p129 = scmp.lt.s32.totalorder %s23, 1
      %s130 = scalar_select %p129, %s23, 1
      %p131 = scmp.lt.s32.totalorder %s24, 0
      %s132 = scalar_select %p131, %s24, 0
      %s133 = sadd.s32 %s132, %s130
      %s134 = smul.addr %s133, 4
      %s135 = scalar_lea.vmem %s2, %s134
      %p136 = scmp.lt.s32.totalorder %s23, 1
      %s137 = scalar_select %p136, %s23, 1
      %p138 = scmp.lt.s32.totalorder %s24, 0
      %s139 = scalar_select %p138, %s24, 0
      %s140 = sadd.s32 %s139, %s137
      %s141 = smul.addr %s140, 4
      %s142 = scalar_lea.vmem %s1, %s141
      %p143 = scmp.lt.s32.totalorder %s23, 1
      %s144 = scalar_select %p143, %s23, 1
      %p145 = scmp.lt.s32.totalorder %s24, 0
      %s146 = scalar_select %p145, %s24, 0
      %s147 = sadd.s32 %s146, %s144
      %s148 = smul.addr %s147, 4
      %s149 = scalar_lea.vmem %s2, %s148
      %s150 = sld [smem:[#allocation3 + %s23]]
      %v151 = vlaneseq
      %v152 = vshrl.u32 %v151, 7
      %v153 = vlaneseq
      %v154 = vand.u32 %v153, 127
      %s155 = smul.u32 %s24, 512
      %v156 = vmul.u32 %v152, 128
      %v157 = vstv %s155
      %v158 = vadd.s32 %v157, %v156
      %v159 = vadd.s32 %v158, %v154
      %v160 = vstv %s150
      %vm161 = vcmp.lt.s32.totalorder %v159, %v160
      %v162 = vld [vmem:[%s142] sm:$0xf]
      %v163 = vsel %vm161, %v162, 0.0
      %164 = vst [vmem:[%s149] sm:$0xf] %v163
      %p165 = scmp.lt.s32.totalorder %s23, 1
      %s166 = scalar_select %p165, %s23, 1
      %p167 = scmp.lt.s32.totalorder %s24, 0
      %s168 = scalar_select %p167, %s24, 0
      %s169 = sadd.s32 %s168, %s166
      %s170 = smul.addr %s169, 4
      %s171 = scalar_lea.vmem %s2, %s170
      // Predicated region
      $region25: #{nested_dropout.1} parent=23 // pred_check
        %p172 = pneg %p79
      $region26: #{nested_dropout.1} parent=23 // pred_check_branch
        %174 = sbr.rel (%p172) target = $region28
      $region27: #{nested_dropout.1} parent=23 // pred_region
        _
      $region28: #{nested_dropout.1} parent=23 // pred_fallthru
        _
    $region24: #{nested_dropout.1} parent=5 // pred_fallthru
      _
    %p175 = scmp.le.s32.totalorder 2, %s14
    // Predicated region
    $region29: #{nested_dropout.1} parent=5 // pred_check
      %p176 = pneg %p175
    $region30: #{nested_dropout.1} parent=5 // pred_check_branch
      %178 = sbr.rel (%p176) target = $region32
    $region31: #{nested_dropout.1} parent=5 // pred_region
      %s179 = ssub.s32 %s14, 2
      // Predicated region
      $region33: #{nested_dropout.1} parent=31 // pred_check
        %p180 = pneg %p85
      $region34: #{nested_dropout.1} parent=31 // pred_check_branch
        %182 = sbr.rel (%p180) target = $region36
      $region35: #{nested_dropout.1} parent=31 // pred_region
        %p183 = scmp.lt.s32.totalorder %s25, 1
        %s184 = scalar_select %p183, %s25, 1
        %p185 = scmp.lt.s32.totalorder %s26, 0
        %s186 = scalar_select %p185, %s26, 0
        %s187 = sadd.s32 %s186, %s184
        %s188 = smul.addr %s187, 4
        %s189 = scalar_lea.vmem %s2, %s188
      $region36: #{nested_dropout.1} parent=31 // pred_fallthru
        _
    $region32: #{nested_dropout.1} parent=5 // pred_fallthru
      _
  $region6: #{nested_dropout.1} parent=0 // loop_footer
    %s18 = sadd.s32 1, %s14
  $region7: #{nested_dropout.1} parent=0 // loop_footer_branch
    %13 = sbr.rel target = $region3
  $region8: #{nested_dropout.1} parent=0 // loop_exit
    _

</llo_original>
